<compile_context>
chip_gen: v5e
topology: v5e:2x2
jax: 0.10.0
libtpu: 0.0.40
codegen_flags: <defaults>
</compile_context>

<pallas_src>
import math

import jax
import jax.numpy as jnp
from jax.experimental import pallas as pl
from jax.experimental.pallas import tpu as pltpu


# ----------------------------- Pallas kernel ---------------------------------
def _packed_embed_kernel(x_ref, w_ref, pb_ref, o_ref):
    # x_ref : (tm, R*K)   row block of the shared flat patch buffer
    # w_ref : (R*K, R*C)  block-diagonal packed weights   (grid invariant)
    # pb_ref: (1,  R*C)   bias + positional-embedding row (grid invariant)
    # o_ref : (tm, R*C)   packed q|k output slab (lane dense)
    y = jnp.dot(x_ref[...], w_ref[...], preferred_element_type=jnp.float32)
    o_ref[...] = (y + pb_ref[...]).astype(o_ref.dtype)


# --------------------------- tiling / budgeting -------------------------------
def _vmem_budget():
    """(block working-set budget, vmem_limit_bytes) derived from the chip."""
    cap = 64 << 20                        # assume the smallest (v7x) VMEM if query fails
    try:
        cap = int(pltpu.get_tpu_info().vmem_capacity_bytes)
    except Exception:
        pass
    budget = int(cap * 0.55)              # inputs + outputs + invariants per step
    limit = min(int(cap * 0.75), 112 << 20)   # ~96 MiB on v5e/v6e, ~48 MiB on v7x
    return budget, limit


def _pick_fold(M, K, C, max_w_bytes):
    """Smallest fold R (R | M) making the input block lane dense (R*K % 128 == 0)
    without blowing the packed-weight budget; 1 if none exists (still correct)."""
    for R in range(1, M + 1):
        if M % R:
            continue
        if (R * K) % 128 != 0:
            continue
        if (R * K) * (R * C) * 4 <= max_w_bytes:
            return R
        break                             # weight bytes only grow with R
    return 1


def _pick_row_block(Mr, row_in_bytes, row_out_bytes, invariant_bytes, budget):
    """Largest sublane-aligned row block that fits the VMEM budget.

    Single step when everything fits (no forced split on single-TC v5e/v6e);
    when a split is required, prefer an even step count so v7x's two
    TensorCores get balanced work ("parallel" axis).
    """
    cands = [t for t in range(8, Mr, 8) if Mr % t == 0]
    cands.append(Mr)                      # full extent is always layout-legal

    def fits(t):
        # inputs/outputs double-buffered; invariants already counted in invariant_bytes
        return invariant_bytes + 2 * t * (row_in_bytes + row_out_bytes) <= budget

    feas = [t for t in cands if fits(t)]
    if not feas:
        return min(cands)                 # smallest legal block; vmem limit is raised anyway
    if Mr in feas:
        return Mr                         # one step: no forced split on 1-TC chips
    even = [t for t in feas if (Mr // t) % 2 == 0]
    return max(even) if even else max(feas)


# ------------------------------ host-side glue --------------------------------
def sinusoidal_pe(max_len, d_model):
    position = jnp.arange(max_len, dtype=jnp.float32)[:, None]
    div_term = jnp.exp(
        jnp.arange(0, d_model, 2, dtype=jnp.float32) * (-math.log(10000.0) / d_model)
    )
    pe = jnp.zeros((max_len, d_model), dtype=jnp.float32)
    pe = pe.at[:, 0::2].set(jnp.sin(position * div_term))
    pe = pe.at[:, 1::2].set(jnp.cos(position * div_term))
    return pe


def init_linear(key, in_features, out_features):
    """nn.Linear default init: U(-1/sqrt(fan_in), 1/sqrt(fan_in))."""
    kw, kb = jax.random.split(key)
    bound = 1.0 / math.sqrt(in_features)
    w = jax.random.uniform(kw, (out_features, in_features), jnp.float32, -bound, bound)
    b = jax.random.uniform(kb, (out_features,), jnp.float32, -bound, bound)
    return w, b


def _prepare_patches(x, patch_size, stride, padding):
    """permute -> ReplicationPad1d((0, padding)) -> unfold -> flat (M, K) buffer."""
    B, L, e_in = x.shape
    xt = jnp.transpose(x, (0, 2, 1))                          # (B, e_in, L)
    if padding > 0:
        xt = jnp.concatenate(
            [xt, jnp.repeat(xt[:, :, -1:], padding, axis=-1)], axis=-1
        )
    Lp = L + padding
    patch_num = (Lp - patch_size) // stride + 1
    idx = jnp.arange(patch_num)[:, None] * stride + jnp.arange(patch_size)[None, :]
    unf = xt[:, :, idx]                                       # (B, e_in, patch_num, patch_size)
    # torch .reshape reinterpretation of the contiguous flat buffer:
    flat2d = unf.reshape(B * patch_size, e_in * patch_num)    # (M, K) with M=B*ps, K=e_in*pn
    return flat2d, patch_num


def _build_packed_params(w_q, b_q, w_k, b_k, e_in, patch_num, d_model, fold):
    """Block-diagonal packed weight (R*K, R*C) and folded bias+PE row (1, R*C)."""
    P, D, R = patch_num, d_model, fold
    pe = sinusoidal_pe(max(e_in, P), D)
    # q stream: out[m, e, d] = sum_p flat[m, e*P + p] * w_q[d, p]
    wq_blk = jnp.einsum("pd,ab->apbd", w_q.T, jnp.eye(e_in, dtype=w_q.dtype))
    wq_blk = wq_blk.reshape(e_in * P, e_in * D)
    # k stream: out[m, p, d] = sum_e flat[m, p*e_in + e] * w_k[d, e]
    wk_blk = jnp.einsum("ed,ab->aebd", w_k.T, jnp.eye(P, dtype=w_k.dtype))
    wk_blk = wk_blk.reshape(P * e_in, P * D)
    w_blk = jnp.concatenate([wq_blk, wk_blk], axis=1)         # (K, C)
    pb_blk = jnp.concatenate(
        [(pe[:e_in] + b_q[None, :]).reshape(-1), (pe[:P] + b_k[None, :]).reshape(-1)]
    )                                                         # (C,)
    K, C = w_blk.shape
    w_packed = jnp.einsum("kc,ab->akbc", w_blk, jnp.eye(R, dtype=w_blk.dtype))
    w_packed = w_packed.reshape(R * K, R * C)
    pb_packed = jnp.tile(pb_blk, (R,))[None, :]               # (1, R*C)
    return w_packed, pb_packed


def patch3_embedding(x, params, *, patch_size, stride, padding):
    """Forward pass of Patch3Embedding (eval mode). x: (B, L, e_in) float32."""
    B, _, e_in = x.shape
    w_q, b_q, w_k, b_k = params
    d_model = w_q.shape[0]

    flat2d, patch_num = _prepare_patches(x, patch_size, stride, padding)
    M = B * patch_size
    K = e_in * patch_num
    C = (e_in + patch_num) * d_model

    budget, vmem_limit = _vmem_budget()
    fold = _pick_fold(M, K, C, max_w_bytes=min(4 << 20, budget // 4))
    Mr = M // fold
    w_packed, pb_packed = _build_packed_params(
        w_q, b_q, w_k, b_k, e_in, patch_num, d_model, fold
    )
    x_fold = flat2d.reshape(Mr, fold * K)                     # contiguous -> free reshape

    # Grid-invariant operands budgeted x2 in case the pipeline double-buffers them
    # (cannot verify MLIR in-script; cheap insurance per review).
    invariant_bytes = 2 * (w_packed.size + pb_packed.size) * 4
    tm = _pick_row_block(Mr, fold * K * 4, fold * C * 4, invariant_bytes, budget)
    grid_steps = Mr // tm

    out_packed = pl.pallas_call(
        _packed_embed_kernel,
        out_shape=jax.ShapeDtypeStruct((Mr, fold * C), jnp.float32),
        grid_spec=pltpu.PrefetchScalarGridSpec(
            num_scalar_prefetch=0,
            grid=(grid_steps,),
            in_specs=[
                pl.BlockSpec((tm, fold * K), lambda i: (i, 0)),        # shared x rows
                pl.BlockSpec((fold * K, fold * C), lambda i: (0, 0)),  # packed W (invariant)
                pl.BlockSpec((1, fold * C), lambda i: (0, 0)),         # bias+PE (invariant)
            ],
            out_specs=pl.BlockSpec((tm, fold * C), lambda i: (i, 0)),  # lane-dense slab
        ),
        compiler_params=pltpu.CompilerParams(
            dimension_semantics=("parallel",),
            vmem_limit_bytes=vmem_limit,
        ),
    )(x_fold, w_packed, pb_packed)

    out2 = out_packed.reshape(M, C)                           # contiguous -> free reshape
    out_q = out2[:, : e_in * d_model].reshape(M, e_in, d_model)
    out_k = out2[:, e_in * d_model :].reshape(M, patch_num, d_model)
    return out_q, out_k


# ------------------------------------ main ------------------------------------
if __name__ == "__main__":
    B, L, e_in = 2, 16, 4
    patch_size, stride, padding = 8, 4, 4
    d_model = 32
    patch_num = (L + padding - patch_size) // stride + 1      # = 4

    key = jax.random.PRNGKey(0)
    kx, kq, kk = jax.random.split(key, 3)
    # Round x / W to the bf16 grid so the correctness check is independent of the
    # platform's f32-matmul pass policy (bf16 MXU passes reproduce full f32 exactly
    # on bf16-representable inputs); the kernel itself still computes in f32.
    x = jax.random.normal(kx, (B, L, e_in), jnp.float32)
    x = x.astype(jnp.bfloat16).astype(jnp.float32)
    w_q, b_q = init_linear(kq, patch_num, d_model)            # Linear(patch_num, d_model)
    w_k, b_k = init_linear(kk, e_in, d_model)                 # Linear(e_in,      d_model)
    w_q = w_q.astype(jnp.bfloat16).astype(jnp.float32)
    w_k = w_k.astype(jnp.bfloat16).astype(jnp.float32)
    params = (w_q, b_q, w_k, b_k)

    out_q, out_k = patch3_embedding(
        x, params, patch_size=patch_size, stride=stride, padding=padding
    )
    jax.block_until_ready((out_q, out_k))

    # pure-JAX reference (kept in the loop per review: guards the flat-buffer
    # reinterpretation and the lane-packing against silent layout bugs)
    flat2d, pn = _prepare_patches(x, patch_size, stride, padding)
    M = B * patch_size
    x_q3 = flat2d.reshape(M, e_in, pn)
    x_k3 = flat2d.reshape(M, pn, e_in)
    pe = sinusoidal_pe(max(e_in, pn), d_model)
    ref_q = (jnp.einsum("msf,df->msd", x_q3, w_q,
                        precision=jax.lax.Precision.HIGHEST)
             + b_q + pe[:e_in][None])
    ref_k = (jnp.einsum("msf,df->msd", x_k3, w_k,
                        precision=jax.lax.Precision.HIGHEST)
             + b_k + pe[:pn][None])
    assert out_q.shape == (M, e_in, d_model)
    assert out_k.shape == (M, pn, d_model)
    assert jnp.allclose(out_q, ref_q, atol=1e-4, rtol=1e-4)
    assert jnp.allclose(out_k, ref_k, atol=1e-4, rtol=1e-4)

    print("KERNEL_OK")
</pallas_src>

<mosaic_0001>
module attributes {stable_mosaic.version = 11 : i64} {
  func.func @_packed_embed_kernel(%arg0: i32, %arg1: memref<2x128xf32, #tpu.memory_space<vmem>>, %arg2: memref<128x2048xf32, #tpu.memory_space<vmem>>, %arg3: memref<1x2048xf32, #tpu.memory_space<vmem>>, %arg4: memref<2x2048xf32, #tpu.memory_space<vmem>>) attributes {dimension_semantics = [#tpu.dimension_semantics<parallel>], iteration_bounds = array<i64: 1>, scalar_prefetch = 0 : i64, scratch_operands = 0 : i64, tpu.core_type = #tpu.core_type<tc>, window_params = [{transform_indices = @transform_0, window_bounds = array<i64: 2, 128>}, {pipeline_mode = #tpu.pipeline_mode<synchronous>, transform_indices = @transform_1, window_bounds = array<i64: 128, 2048>}, {pipeline_mode = #tpu.pipeline_mode<synchronous>, transform_indices = @transform_2, window_bounds = array<i64: 1, 2048>}, {transform_indices = @transform_3, window_bounds = array<i64: 2, 2048>}]} {
    %c0 = arith.constant 0 : index
    %c0_0 = arith.constant 0 : index
    %0 = vector.load %arg1[%c0, %c0_0] : memref<2x128xf32, #tpu.memory_space<vmem>>, vector<2x128xf32>
    %c0_1 = arith.constant 0 : index
    %c0_2 = arith.constant 0 : index
    %1 = vector.load %arg2[%c0_1, %c0_2] : memref<128x2048xf32, #tpu.memory_space<vmem>>, vector<128x2048xf32>
    %cst = arith.constant dense<0.000000e+00> : vector<2x2048xf32>
    %2 = tpu.matmul %0, %1, %cst {dimension_numbers = #tpu.dot_dimension_numbers<[1], [0], [0], [1], [0, 0, 1, 1], [], []>} : vector<2x128xf32>, vector<128x2048xf32>, vector<2x2048xf32> -> vector<2x2048xf32>
    %c0_3 = arith.constant 0 : index
    %c0_4 = arith.constant 0 : index
    %3 = vector.load %arg3[%c0_3, %c0_4] : memref<1x2048xf32, #tpu.memory_space<vmem>>, vector<1x2048xf32>
    %4 = vector.broadcast %3 : vector<1x2048xf32> to vector<2x2048xf32>
    %5 = arith.addf %2, %4 : vector<2x2048xf32>
    %c0_5 = arith.constant 0 : index
    %c0_6 = arith.constant 0 : index
    %6 = vector.load %arg4[%c0_5, %c0_6] : memref<2x2048xf32, #tpu.memory_space<vmem>>, vector<2x2048xf32>
    tpu.vector_store %arg4[%c0_5, %c0_6], %5 {strides = array<i32>} : memref<2x2048xf32, #tpu.memory_space<vmem>>, vector<2x2048xf32>,
    return
  }
  func.func @transform_0(%arg0: i32) -> (i32, i32) {
    %c0_i32 = arith.constant 0 : i32
    %c0_i32_0 = arith.constant 0 : i32
    return %arg0, %c0_i32 : i32, i32
  }
  func.func @transform_1(%arg0: i32) -> (i32, i32) {
    %c0_i32 = arith.constant 0 : i32
    %c0_i32_0 = arith.constant 0 : i32
    %c0_i32_1 = arith.constant 0 : i32
    return %c0_i32, %c0_i32_0 : i32, i32
  }
  func.func @transform_2(%arg0: i32) -> (i32, i32) {
    %c0_i32 = arith.constant 0 : i32
    %c0_i32_0 = arith.constant 0 : i32
    %c0_i32_1 = arith.constant 0 : i32
    return %c0_i32, %c0_i32_0 : i32, i32
  }
  func.func @transform_3(%arg0: i32) -> (i32, i32) {
    %c0_i32 = arith.constant 0 : i32
    %c0_i32_0 = arith.constant 0 : i32
    return %arg0, %c0_i32 : i32, i32
  }
}

</mosaic_0001>

<llo_original>
// kernel: tpu_custom_call.1
$region0: #{tpu_custom_call.1}
  #allocation0 [shape = 'u32[]', space=smem, size = 0x4, offset = 0x4, fixed_abs, tag = 'smem constant byte address 0x4 - core index']
  #allocation1 [shape = 'u32[72,128]{1,0:T(1,128)}', space=vmem, size = 0x9000, scoped, tag = 'internal scratch']
  %s0 = inlined_call_operand.hbm [shape: f32[2,128], index: 0, kind: input, shape index: {}]
  %s1 = inlined_call_operand.hbm [shape: f32[128,2048], index: 1, kind: input, shape index: {}]
  %s2 = inlined_call_operand.hbm [shape: f32[1,2048], index: 2, kind: input, shape index: {}]
  %s3 = inlined_call_operand.hbm [shape: f32[2,2048], index: 3, kind: output, shape index: {}]
  %s4 = sld [smem:[#allocation0]]
  $region34: #{tpu_custom_call.1} parent=0
    _
  %s6 = ssub.s32 1, %s4
  %s7 = scalar_select 0, %s6, %s4
  $region1: #{tpu_custom_call.1} parent=0
    #allocation2 [shape = 'u8[1024]{0}', space=vmem, size = 0x400, scoped, tag = 'input window, operand 0, single buffered']
    #allocation3 [shape = 's32[1]{0}', space=sflag, size = 0x4, scoped, tag = 'scoped memory for tpu_custom_call.1']
    #allocation4 [shape = 's32[1]{0}', space=sflag, size = 0x4, scoped, tag = 'scoped memory for tpu_custom_call.1']
    #allocation5 [shape = 'u8[1048576]{0}', space=vmem, size = 0x100000, scoped, tag = 'input window, operand 1, single buffered']
    #allocation6 [shape = 's32[1]{0}', space=sflag, size = 0x4, scoped, tag = 'scoped memory for tpu_custom_call.1']
    #allocation7 [shape = 'u8[8192]{0}', space=vmem, size = 0x2000, scoped, tag = 'input window, operand 2, single buffered']
    #allocation8 [shape = 'u8[16384]{0}', space=vmem, size = 0x4000, scoped, tag = 'output window, operand 0, single buffered']
    %8 = vsyncpa [#allocation3], 0
    %9 = vsyncpa [#allocation6], 0
    %10 = vsyncpa [#allocation4], 0
    // Predicated region
    $region2: #{tpu_custom_call.1} parent=1 // pred_check
      _
    $region3: #{tpu_custom_call.1} parent=1 // pred_check_branch
      %12 = sbr.rel (0) target = $region5
    $region4: #{tpu_custom_call.1} parent=1 // pred_region
      %14 = vsyncadd [#allocation3], 0
      %s16 = sshll.u32 %s0, 4
      %s17 = int_to_ptr.hbm [resolvable:$true] %s16
      %s18 = sshll.u32 [#allocation2], 4
      %s19 = int_to_ptr.vmem [resolvable:$true] %s18
      %21 = dma.hbm_to_vmem [thread:$0]  %s17, 32, %s19, [#allocation3]
    $region5: #{tpu_custom_call.1} parent=1 // pred_fallthru
      _
    // Predicated region
    $region6: #{tpu_custom_call.1} parent=1 // pred_check
      _
    $region7: #{tpu_custom_call.1} parent=1 // pred_check_branch
      %23 = sbr.rel (0) target = $region9
    $region8: #{tpu_custom_call.1} parent=1 // pred_region
      %25 = vsyncadd [#allocation6], 0
      %s26 = sshll.u32 %s1, 4
      %s27 = int_to_ptr.hbm [resolvable:$true] %s26
      %s28 = sshll.u32 [#allocation5], 4
      %s29 = int_to_ptr.vmem [resolvable:$true] %s28
      %34 = dma.hbm_to_vmem [thread:$0]  %s27, 32768, %s29, [#allocation6], 2048, 2048, 128
    $region9: #{tpu_custom_call.1} parent=1 // pred_fallthru
      _
    // Predicated region
    $region10: #{tpu_custom_call.1} parent=1 // pred_check
      _
    $region11: #{tpu_custom_call.1} parent=1 // pred_check_branch
      %36 = sbr.rel (0) target = $region13
    $region12: #{tpu_custom_call.1} parent=1 // pred_region
      %38 = vsyncadd [#allocation6], 0
      %s40 = sshll.u32 %s2, 4
      %s41 = int_to_ptr.hbm [resolvable:$true] %s40
      %s42 = sshll.u32 [#allocation7], 4
      %s43 = int_to_ptr.vmem [resolvable:$true] %s42
      %45 = dma.hbm_to_vmem [thread:$0]  %s41, 256, %s43, [#allocation6]
    $region13: #{tpu_custom_call.1} parent=1 // pred_fallthru
      _
    // Predicated region
    $region14: #{tpu_custom_call.1} parent=1 // pred_check
      _
    $region15: #{tpu_custom_call.1} parent=1 // pred_check_branch
      %47 = sbr.rel (0) target = $region17
    $region16: #{tpu_custom_call.1} parent=1 // pred_region
      %49 = dma.done [#allocation3], 32
    $region17: #{tpu_custom_call.1} parent=1 // pred_fallthru
      _
    // Predicated region
    $region18: #{tpu_custom_call.1} parent=1 // pred_check
      _
    $region19: #{tpu_custom_call.1} parent=1 // pred_check_branch
      %51 = sbr.rel (0) target = $region21
    $region20: #{tpu_custom_call.1} parent=1 // pred_region
      %53 = dma.done [#allocation6], 32768
    $region21: #{tpu_custom_call.1} parent=1 // pred_fallthru
      _
    // Predicated region
    $region22: #{tpu_custom_call.1} parent=1 // pred_check
      _
    $region23: #{tpu_custom_call.1} parent=1 // pred_check_branch
      %55 = sbr.rel (0) target = $region25
    $region24: #{tpu_custom_call.1} parent=1 // pred_region
      %57 = dma.done [#allocation6], 256
    $region25: #{tpu_custom_call.1} parent=1 // pred_fallthru
      _
    %v58 = vld [vmem:[#allocation2] sm:$0x3]
    %v59 = vld [vmem:[#allocation5] sm:$0xff]
    %v60 = vld [vmem:[#allocation5 + $0x8] sm:$0xff]
    %v61 = vld [vmem:[#allocation5 + $0x10] sm:$0xff]
    %v62 = vld [vmem:[#allocation5 + $0x18] sm:$0xff]
    %v63 = vld [vmem:[#allocation5 + $0x20] sm:$0xff]
    %v64 = vld [vmem:[#allocation5 + $0x28] sm:$0xff]
    %v65 = vld [vmem:[#allocation5 + $0x30] sm:$0xff]
    %v66 = vld [vmem:[#allocation5 + $0x38] sm:$0xff]
    %v67 = vld [vmem:[#allocation5 + $0x40] sm:$0xff]
    %v68 = vld [vmem:[#allocation5 + $0x48] sm:$0xff]
    %v69 = vld [vmem:[#allocation5 + $0x50] sm:$0xff]
    %v70 = vld [vmem:[#allocation5 + $0x58] sm:$0xff]
    %v71 = vld [vmem:[#allocation5 + $0x60] sm:$0xff]
    %v72 = vld [vmem:[#allocation5 + $0x68] sm:$0xff]
    %v73 = vld [vmem:[#allocation5 + $0x70] sm:$0xff]
    %v74 = vld [vmem:[#allocation5 + $0x78] sm:$0xff]
    %v75 = vld [vmem:[#allocation5 + $0x80] sm:$0xff]
    %v76 = vld [vmem:[#allocation5 + $0x88] sm:$0xff]
    %v77 = vld [vmem:[#allocation5 + $0x90] sm:$0xff]
    %v78 = vld [vmem:[#allocation5 + $0x98] sm:$0xff]
    %v79 = vld [vmem:[#allocation5 + $0xa0] sm:$0xff]
    %v80 = vld [vmem:[#allocation5 + $0xa8] sm:$0xff]
    %v81 = vld [vmem:[#allocation5 + $0xb0] sm:$0xff]
    %v82 = vld [vmem:[#allocation5 + $0xb8] sm:$0xff]
    %v83 = vld [vmem:[#allocation5 + $0xc0] sm:$0xff]
    %v84 = vld [vmem:[#allocation5 + $0xc8] sm:$0xff]
    %v85 = vld [vmem:[#allocation5 + $0xd0] sm:$0xff]
    %v86 = vld [vmem:[#allocation5 + $0xd8] sm:$0xff]
    %v87 = vld [vmem:[#allocation5 + $0xe0] sm:$0xff]
    %v88 = vld [vmem:[#allocation5 + $0xe8] sm:$0xff]
    %v89 = vld [vmem:[#allocation5 + $0xf0] sm:$0xff]
    %v90 = vld [vmem:[#allocation5 + $0xf8] sm:$0xff]
    %v91 = vld [vmem:[#allocation5 + $0x100] sm:$0xff]
    %v92 = vld [vmem:[#allocation5 + $0x108] sm:$0xff]
    %v93 = vld [vmem:[#allocation5 + $0x110] sm:$0xff]
    %v94 = vld [vmem:[#allocation5 + $0x118] sm:$0xff]
    %v95 = vld [vmem:[#allocation5 + $0x120] sm:$0xff]
    %v96 = vld [vmem:[#allocation5 + $0x128] sm:$0xff]
    %v97 = vld [vmem:[#allocation5 + $0x130] sm:$0xff]
    %v98 = vld [vmem:[#allocation5 + $0x138] sm:$0xff]
    %v99 = vld [vmem:[#allocation5 + $0x140] sm:$0xff]
    %v100 = vld [vmem:[#allocation5 + $0x148] sm:$0xff]
    %v101 = vld [vmem:[#allocation5 + $0x150] sm:$0xff]
    %v102 = vld [vmem:[#allocation5 + $0x158] sm:$0xff]
    %v103 = vld [vmem:[#allocation5 + $0x160] sm:$0xff]
    %v104 = vld [vmem:[#allocation5 + $0x168] sm:$0xff]
    %v105 = vld [vmem:[#allocation5 + $0x170] sm:$0xff]
    %v106 = vld [vmem:[#allocation5 + $0x178] sm:$0xff]
    %v107 = vld [vmem:[#allocation5 + $0x180] sm:$0xff]
    %v108 = vld [vmem:[#allocation5 + $0x188] sm:$0xff]
    %v109 = vld [vmem:[#allocation5 + $0x190] sm:$0xff]
    %v110 = vld [vmem:[#allocation5 + $0x198] sm:$0xff]
    %v111 = vld [vmem:[#allocation5 + $0x1a0] sm:$0xff]
    %v112 = vld [vmem:[#allocation5 + $0x1a8] sm:$0xff]
    %v113 = vld [vmem:[#allocation5 + $0x1b0] sm:$0xff]
    %v114 = vld [vmem:[#allocation5 + $0x1b8] sm:$0xff]
    %v115 = vld [vmem:[#allocation5 + $0x1c0] sm:$0xff]
    %v116 = vld [vmem:[#allocation5 + $0x1c8] sm:$0xff]
    %v117 = vld [vmem:[#allocation5 + $0x1d0] sm:$0xff]
    %v118 = vld [vmem:[#allocation5 + $0x1d8] sm:$0xff]
    %v119 = vld [vmem:[#allocation5 + $0x1e0] sm:$0xff]
    %v120 = vld [vmem:[#allocation5 + $0x1e8] sm:$0xff]
    %v121 = vld [vmem:[#allocation5 + $0x1f0] sm:$0xff]
    %v122 = vld [vmem:[#allocation5 + $0x1f8] sm:$0xff]
    %v123 = vld [vmem:[#allocation5 + $0x200] sm:$0xff]
    %v124 = vld [vmem:[#allocation5 + $0x208] sm:$0xff]
    %v125 = vld [vmem:[#allocation5 + $0x210] sm:$0xff]
    %v126 = vld [vmem:[#allocation5 + $0x218] sm:$0xff]
    %v127 = vld [vmem:[#allocation5 + $0x220] sm:$0xff]
    %v128 = vld [vmem:[#allocation5 + $0x228] sm:$0xff]
    %v129 = vld [vmem:[#allocation5 + $0x230] sm:$0xff]
    %v130 = vld [vmem:[#allocation5 + $0x238] sm:$0xff]
    %v131 = vld [vmem:[#allocation5 + $0x240] sm:$0xff]
    %v132 = vld [vmem:[#allocation5 + $0x248] sm:$0xff]
    %v133 = vld [vmem:[#allocation5 + $0x250] sm:$0xff]
    %v134 = vld [vmem:[#allocation5 + $0x258] sm:$0xff]
    %v135 = vld [vmem:[#allocation5 + $0x260] sm:$0xff]
    %v136 = vld [vmem:[#allocation5 + $0x268] sm:$0xff]
    %v137 = vld [vmem:[#allocation5 + $0x270] sm:$0xff]
    %v138 = vld [vmem:[#allocation5 + $0x278] sm:$0xff]
    %v139 = vld [vmem:[#allocation5 + $0x280] sm:$0xff]
    %v140 = vld [vmem:[#allocation5 + $0x288] sm:$0xff]
    %v141 = vld [vmem:[#allocation5 + $0x290] sm:$0xff]
    %v142 = vld [vmem:[#allocation5 + $0x298] sm:$0xff]
    %v143 = vld [vmem:[#allocation5 + $0x2a0] sm:$0xff]
    %v144 = vld [vmem:[#allocation5 + $0x2a8] sm:$0xff]
    %v145 = vld [vmem:[#allocation5 + $0x2b0] sm:$0xff]
    %v146 = vld [vmem:[#allocation5 + $0x2b8] sm:$0xff]
    %v147 = vld [vmem:[#allocation5 + $0x2c0] sm:$0xff]
    %v148 = vld [vmem:[#allocation5 + $0x2c8] sm:$0xff]
    %v149 = vld [vmem:[#allocation5 + $0x2d0] sm:$0xff]
    %v150 = vld [vmem:[#allocation5 + $0x2d8] sm:$0xff]
    %v151 = vld [vmem:[#allocation5 + $0x2e0] sm:$0xff]
    %v152 = vld [vmem:[#allocation5 + $0x2e8] sm:$0xff]
    %v153 = vld [vmem:[#allocation5 + $0x2f0] sm:$0xff]
    %v154 = vld [vmem:[#allocation5 + $0x2f8] sm:$0xff]
    %v155 = vld [vmem:[#allocation5 + $0x300] sm:$0xff]
    %v156 = vld [vmem:[#allocation5 + $0x308] sm:$0xff]
    %v157 = vld [vmem:[#allocation5 + $0x310] sm:$0xff]
    %v158 = vld [vmem:[#allocation5 + $0x318] sm:$0xff]
    %v159 = vld [vmem:[#allocation5 + $0x320] sm:$0xff]
    %v160 = vld [vmem:[#allocation5 + $0x328] sm:$0xff]
    %v161 = vld [vmem:[#allocation5 + $0x330] sm:$0xff]
    %v162 = vld [vmem:[#allocation5 + $0x338] sm:$0xff]
    %v163 = vld [vmem:[#allocation5 + $0x340] sm:$0xff]
    %v164 = vld [vmem:[#allocation5 + $0x348] sm:$0xff]
    %v165 = vld [vmem:[#allocation5 + $0x350] sm:$0xff]
    %v166 = vld [vmem:[#allocation5 + $0x358] sm:$0xff]
    %v167 = vld [vmem:[#allocation5 + $0x360] sm:$0xff]
    %v168 = vld [vmem:[#allocation5 + $0x368] sm:$0xff]
    %v169 = vld [vmem:[#allocation5 + $0x370] sm:$0xff]
    %v170 = vld [vmem:[#allocation5 + $0x378] sm:$0xff]
    %v171 = vld [vmem:[#allocation5 + $0x380] sm:$0xff]
    %v172 = vld [vmem:[#allocation5 + $0x388] sm:$0xff]
    %v173 = vld [vmem:[#allocation5 + $0x390] sm:$0xff]
    %v174 = vld [vmem:[#allocation5 + $0x398] sm:$0xff]
    %v175 = vld [vmem:[#allocation5 + $0x3a0] sm:$0xff]
    %v176 = vld [vmem:[#allocation5 + $0x3a8] sm:$0xff]
    %v177 = vld [vmem:[#allocation5 + $0x3b0] sm:$0xff]
    %v178 = vld [vmem:[#allocation5 + $0x3b8] sm:$0xff]
    %v179 = vld [vmem:[#allocation5 + $0x3c0] sm:$0xff]
    %v180 = vld [vmem:[#allocation5 + $0x3c8] sm:$0xff]
    %v181 = vld [vmem:[#allocation5 + $0x3d0] sm:$0xff]
    %v182 = vld [vmem:[#allocation5 + $0x3d8] sm:$0xff]
    %v183 = vld [vmem:[#allocation5 + $0x3e0] sm:$0xff]
    %v184 = vld [vmem:[#allocation5 + $0x3e8] sm:$0xff]
    %v185 = vld [vmem:[#allocation5 + $0x3f0] sm:$0xff]
    %v186 = vld [vmem:[#allocation5 + $0x3f8] sm:$0xff]
    %v187 = vld [vmem:[#allocation5 + $0x400] sm:$0xff]
    %v188 = vld [vmem:[#allocation5 + $0x408] sm:$0xff]
    %v189 = vld [vmem:[#allocation5 + $0x410] sm:$0xff]
    %v190 = vld [vmem:[#allocation5 + $0x418] sm:$0xff]
    %v191 = vld [vmem:[#allocation5 + $0x420] sm:$0xff]
    %v192 = vld [vmem:[#allocation5 + $0x428] sm:$0xff]
    %v193 = vld [vmem:[#allocation5 + $0x430] sm:$0xff]
    %v194 = vld [vmem:[#allocation5 + $0x438] sm:$0xff]
    %v195 = vld [vmem:[#allocation5 + $0x440] sm:$0xff]
    %v196 = vld [vmem:[#allocation5 + $0x448] sm:$0xff]
    %v197 = vld [vmem:[#allocation5 + $0x450] sm:$0xff]
    %v198 = vld [vmem:[#allocation5 + $0x458] sm:$0xff]
    %v199 = vld [vmem:[#allocation5 + $0x460] sm:$0xff]
    %v200 = vld [vmem:[#allocation5 + $0x468] sm:$0xff]
    %v201 = vld [vmem:[#allocation5 + $0x470] sm:$0xff]
    %v202 = vld [vmem:[#allocation5 + $0x478] sm:$0xff]
    %v203 = vld [vmem:[#allocation5 + $0x480] sm:$0xff]
    %v204 = vld [vmem:[#allocation5 + $0x488] sm:$0xff]
    %v205 = vld [vmem:[#allocation5 + $0x490] sm:$0xff]
    %v206 = vld [vmem:[#allocation5 + $0x498] sm:$0xff]
    %v207 = vld [vmem:[#allocation5 + $0x4a0] sm:$0xff]
    %v208 = vld [vmem:[#allocation5 + $0x4a8] sm:$0xff]
    %v209 = vld [vmem:[#allocation5 + $0x4b0] sm:$0xff]
    %v210 = vld [vmem:[#allocation5 + $0x4b8] sm:$0xff]
    %v211 = vld [vmem:[#allocation5 + $0x4c0] sm:$0xff]
    %v212 = vld [vmem:[#allocation5 + $0x4c8] sm:$0xff]
    %v213 = vld [vmem:[#allocation5 + $0x4d0] sm:$0xff]
    %v214 = vld [vmem:[#allocation5 + $0x4d8] sm:$0xff]
    %v215 = vld [vmem:[#allocation5 + $0x4e0] sm:$0xff]
    %v216 = vld [vmem:[#allocation5 + $0x4e8] sm:$0xff]
    %v217 = vld [vmem:[#allocation5 + $0x4f0] sm:$0xff]
    %v218 = vld [vmem:[#allocation5 + $0x4f8] sm:$0xff]
    %v219 = vld [vmem:[#allocation5 + $0x500] sm:$0xff]
    %v220 = vld [vmem:[#allocation5 + $0x508] sm:$0xff]
    %v221 = vld [vmem:[#allocation5 + $0x510] sm:$0xff]
    %v222 = vld [vmem:[#allocation5 + $0x518] sm:$0xff]
    %v223 = vld [vmem:[#allocation5 + $0x520] sm:$0xff]
    %v224 = vld [vmem:[#allocation5 + $0x528] sm:$0xff]
    %v225 = vld [vmem:[#allocation5 + $0x530] sm:$0xff]
    %v226 = vld [vmem:[#allocation5 + $0x538] sm:$0xff]
    %v227 = vld [vmem:[#allocation5 + $0x540] sm:$0xff]
    %v228 = vld [vmem:[#allocation5 + $0x548] sm:$0xff]
    %v229 = vld [vmem:[#allocation5 + $0x550] sm:$0xff]
    %v230 = vld [vmem:[#allocation5 + $0x558] sm:$0xff]
    %v231 = vld [vmem:[#allocation5 + $0x560] sm:$0xff]
    %v232 = vld [vmem:[#allocation5 + $0x568] sm:$0xff]
    %v233 = vld [vmem:[#allocation5 + $0x570] sm:$0xff]
    %v234 = vld [vmem:[#allocation5 + $0x578] sm:$0xff]
    %v235 = vld [vmem:[#allocation5 + $0x580] sm:$0xff]
    %v236 = vld [vmem:[#allocation5 + $0x588] sm:$0xff]
    %v237 = vld [vmem:[#allocation5 + $0x590] sm:$0xff]
    %v238 = vld [vmem:[#allocation5 + $0x598] sm:$0xff]
    %v239 = vld [vmem:[#allocation5 + $0x5a0] sm:$0xff]
    %v240 = vld [vmem:[#allocation5 + $0x5a8] sm:$0xff]
    %v241 = vld [vmem:[#allocation5 + $0x5b0] sm:$0xff]
    %v242 = vld [vmem:[#allocation5 + $0x5b8] sm:$0xff]
    %v243 = vld [vmem:[#allocation5 + $0x5c0] sm:$0xff]
    %v244 = vld [vmem:[#allocation5 + $0x5c8] sm:$0xff]
    %v245 = vld [vmem:[#allocation5 + $0x5d0] sm:$0xff]
    %v246 = vld [vmem:[#allocation5 + $0x5d8] sm:$0xff]
    %v247 = vld [vmem:[#allocation5 + $0x5e0] sm:$0xff]
    %v248 = vld [vmem:[#allocation5 + $0x5e8] sm:$0xff]
    %v249 = vld [vmem:[#allocation5 + $0x5f0] sm:$0xff]
    %v250 = vld [vmem:[#allocation5 + $0x5f8] sm:$0xff]
    %v251 = vld [vmem:[#allocation5 + $0x600] sm:$0xff]
    %v252 = vld [vmem:[#allocation5 + $0x608] sm:$0xff]
    %v253 = vld [vmem:[#allocation5 + $0x610] sm:$0xff]
    %v254 = vld [vmem:[#allocation5 + $0x618] sm:$0xff]
    %v255 = vld [vmem:[#allocation5 + $0x620] sm:$0xff]
    %v256 = vld [vmem:[#allocation5 + $0x628] sm:$0xff]
    %v257 = vld [vmem:[#allocation5 + $0x630] sm:$0xff]
    %v258 = vld [vmem:[#allocation5 + $0x638] sm:$0xff]
    %v259 = vld [vmem:[#allocation5 + $0x640] sm:$0xff]
    %v260 = vld [vmem:[#allocation5 + $0x648] sm:$0xff]
    %v261 = vld [vmem:[#allocation5 + $0x650] sm:$0xff]
    %v262 = vld [vmem:[#allocation5 + $0x658] sm:$0xff]
    %v263 = vld [vmem:[#allocation5 + $0x660] sm:$0xff]
    %v264 = vld [vmem:[#allocation5 + $0x668] sm:$0xff]
    %v265 = vld [vmem:[#allocation5 + $0x670] sm:$0xff]
    %v266 = vld [vmem:[#allocation5 + $0x678] sm:$0xff]
    %v267 = vld [vmem:[#allocation5 + $0x680] sm:$0xff]
    %v268 = vld [vmem:[#allocation5 + $0x688] sm:$0xff]
    %v269 = vld [vmem:[#allocation5 + $0x690] sm:$0xff]
    %v270 = vld [vmem:[#allocation5 + $0x698] sm:$0xff]
    %v271 = vld [vmem:[#allocation5 + $0x6a0] sm:$0xff]
    %v272 = vld [vmem:[#allocation5 + $0x6a8] sm:$0xff]
    %v273 = vld [vmem:[#allocation5 + $0x6b0] sm:$0xff]
    %v274 = vld [vmem:[#allocation5 + $0x6b8] sm:$0xff]
    %v275 = vld [vmem:[#allocation5 + $0x6c0] sm:$0xff]
    %v276 = vld [vmem:[#allocation5 + $0x6c8] sm:$0xff]
    %v277 = vld [vmem:[#allocation5 + $0x6d0] sm:$0xff]
    %v278 = vld [vmem:[#allocation5 + $0x6d8] sm:$0xff]
    %v279 = vld [vmem:[#allocation5 + $0x6e0] sm:$0xff]
    %v280 = vld [vmem:[#allocation5 + $0x6e8] sm:$0xff]
    %v281 = vld [vmem:[#allocation5 + $0x6f0] sm:$0xff]
    %v282 = vld [vmem:[#allocation5 + $0x6f8] sm:$0xff]
    %v283 = vld [vmem:[#allocation5 + $0x700] sm:$0xff]
    %v284 = vld [vmem:[#allocation5 + $0x708] sm:$0xff]
    %v285 = vld [vmem:[#allocation5 + $0x710] sm:$0xff]
    %v286 = vld [vmem:[#allocation5 + $0x718] sm:$0xff]
    %v287 = vld [vmem:[#allocation5 + $0x720] sm:$0xff]
    %v288 = vld [vmem:[#allocation5 + $0x728] sm:$0xff]
    %v289 = vld [vmem:[#allocation5 + $0x730] sm:$0xff]
    %v290 = vld [vmem:[#allocation5 + $0x738] sm:$0xff]
    %v291 = vld [vmem:[#allocation5 + $0x740] sm:$0xff]
    %v292 = vld [vmem:[#allocation5 + $0x748] sm:$0xff]
    %v293 = vld [vmem:[#allocation5 + $0x750] sm:$0xff]
    %v294 = vld [vmem:[#allocation5 + $0x758] sm:$0xff]
    %v295 = vld [vmem:[#allocation5 + $0x760] sm:$0xff]
    %v296 = vld [vmem:[#allocation5 + $0x768] sm:$0xff]
    %v297 = vld [vmem:[#allocation5 + $0x770] sm:$0xff]
    %v298 = vld [vmem:[#allocation5 + $0x778] sm:$0xff]
    %v299 = vld [vmem:[#allocation5 + $0x780] sm:$0xff]
    %v300 = vld [vmem:[#allocation5 + $0x788] sm:$0xff]
    %v301 = vld [vmem:[#allocation5 + $0x790] sm:$0xff]
    %v302 = vld [vmem:[#allocation5 + $0x798] sm:$0xff]
    %v303 = vld [vmem:[#allocation5 + $0x7a0] sm:$0xff]
    %v304 = vld [vmem:[#allocation5 + $0x7a8] sm:$0xff]
    %v305 = vld [vmem:[#allocation5 + $0x7b0] sm:$0xff]
    %v306 = vld [vmem:[#allocation5 + $0x7b8] sm:$0xff]
    %v307 = vld [vmem:[#allocation5 + $0x7c0] sm:$0xff]
    %v308 = vld [vmem:[#allocation5 + $0x7c8] sm:$0xff]
    %v309 = vld [vmem:[#allocation5 + $0x7d0] sm:$0xff]
    %v310 = vld [vmem:[#allocation5 + $0x7d8] sm:$0xff]
    %v311 = vld [vmem:[#allocation5 + $0x7e0] sm:$0xff]
    %v312 = vld [vmem:[#allocation5 + $0x7e8] sm:$0xff]
    %v313 = vld [vmem:[#allocation5 + $0x7f0] sm:$0xff]
    %v314 = vld [vmem:[#allocation5 + $0x7f8] sm:$0xff]
    %v315 = vld [vmem:[#allocation7] sm:$0xff]
    %v316 = vld [vmem:[#allocation7 + $0x8] sm:$0xff]
    %v319 = vperm.slane %v315, 0
    %v320 = vperm.slane %v315, 1
    %v321 = vperm.slane %v315, 2
    %v322 = vperm.slane %v315, 3
    %v323 = vperm.slane %v315, 4
    %v324 = vperm.slane %v315, 5
    %v325 = vperm.slane %v315, 6
    %v326 = vperm.slane %v315, 7
    %v327 = vperm.slane %v316, 0
    %v328 = vperm.slane %v316, 1
    %v329 = vperm.slane %v316, 2
    %v330 = vperm.slane %v316, 3
    %v331 = vperm.slane %v316, 4
    %v332 = vperm.slane %v316, 5
    %v333 = vperm.slane %v316, 6
    %v334 = vperm.slane %v316, 7
    %351 = vmatpush.msra.mxu0 %v299
    %352 = vmatpush.msra.mxu0 %v283
    %353 = vmatpush.msra.mxu0 %v267
    %354 = vmatpush.msra.mxu0 %v251
    %355 = vmatpush.msra.mxu0 %v235
    %356 = vmatpush.msra.mxu0 %v219
    %357 = vmatpush.msra.mxu0 %v203
    %358 = vmatpush.msra.mxu0 %v187
    %359 = vmatpush.msra.mxu0 %v171
    %360 = vmatpush.msra.mxu0 %v155
    %361 = vmatpush.msra.mxu0 %v139
    %362 = vmatpush.msra.mxu0 %v123
    %363 = vmatpush.msra.mxu0 %v107
    %364 = vmatpush.msra.mxu0 %v91
    %365 = vmatpush.msra.mxu0 %v75
    %366 = vmatpush.msra.mxu0 %v59
    %367 = vmatmul.f32.gmra.mxu0 %v58
    %v368 = vpop.f32.mrf.mxu0
    %v369 = vadd.f32 %v319, %v368
    %370 = vdwg.mxu0
    %371 = vmatpush.msra.mxu0 %v300
    %372 = vmatpush.msra.mxu0 %v284
    %373 = vmatpush.msra.mxu0 %v268
    %374 = vmatpush.msra.mxu0 %v252
    %375 = vmatpush.msra.mxu0 %v236
    %376 = vmatpush.msra.mxu0 %v220
    %377 = vmatpush.msra.mxu0 %v204
    %378 = vmatpush.msra.mxu0 %v188
    %379 = vmatpush.msra.mxu0 %v172
    %380 = vmatpush.msra.mxu0 %v156
    %381 = vmatpush.msra.mxu0 %v140
    %382 = vmatpush.msra.mxu0 %v124
    %383 = vmatpush.msra.mxu0 %v108
    %384 = vmatpush.msra.mxu0 %v92
    %385 = vmatpush.msra.mxu0 %v76
    %386 = vmatpush.msra.mxu0 %v60
    %387 = vmatmul.f32.gmra.mxu0 %v58
    %v388 = vpop.f32.mrf.mxu0
    %v389 = vadd.f32 %v320, %v388
    %390 = vdwg.mxu0
    %391 = vmatpush.msra.mxu0 %v301
    %392 = vmatpush.msra.mxu0 %v285
    %393 = vmatpush.msra.mxu0 %v269
    %394 = vmatpush.msra.mxu0 %v253
    %395 = vmatpush.msra.mxu0 %v237
    %396 = vmatpush.msra.mxu0 %v221
    %397 = vmatpush.msra.mxu0 %v205
    %398 = vmatpush.msra.mxu0 %v189
    %399 = vmatpush.msra.mxu0 %v173
    %400 = vmatpush.msra.mxu0 %v157
    %401 = vmatpush.msra.mxu0 %v141
    %402 = vmatpush.msra.mxu0 %v125
    %403 = vmatpush.msra.mxu0 %v109
    %404 = vmatpush.msra.mxu0 %v93
    %405 = vmatpush.msra.mxu0 %v77
    %406 = vmatpush.msra.mxu0 %v61
    %407 = vmatmul.f32.gmra.mxu0 %v58
    %v408 = vpop.f32.mrf.mxu0
    %v409 = vadd.f32 %v321, %v408
    %410 = vdwg.mxu0
    %411 = vmatpush.msra.mxu0 %v302
    %412 = vmatpush.msra.mxu0 %v286
    %413 = vmatpush.msra.mxu0 %v270
    %414 = vmatpush.msra.mxu0 %v254
    %415 = vmatpush.msra.mxu0 %v238
    %416 = vmatpush.msra.mxu0 %v222
    %417 = vmatpush.msra.mxu0 %v206
    %418 = vmatpush.msra.mxu0 %v190
    %419 = vmatpush.msra.mxu0 %v174
    %420 = vmatpush.msra.mxu0 %v158
    %421 = vmatpush.msra.mxu0 %v142
    %422 = vmatpush.msra.mxu0 %v126
    %423 = vmatpush.msra.mxu0 %v110
    %424 = vmatpush.msra.mxu0 %v94
    %425 = vmatpush.msra.mxu0 %v78
    %426 = vmatpush.msra.mxu0 %v62
    %427 = vmatmul.f32.gmra.mxu0 %v58
    %v428 = vpop.f32.mrf.mxu0
    %v429 = vadd.f32 %v322, %v428
    %430 = vdwg.mxu0
    %431 = vmatpush.msra.mxu0 %v303
    %432 = vmatpush.msra.mxu0 %v287
    %433 = vmatpush.msra.mxu0 %v271
    %434 = vmatpush.msra.mxu0 %v255
    %435 = vmatpush.msra.mxu0 %v239
    %436 = vmatpush.msra.mxu0 %v223
    %437 = vmatpush.msra.mxu0 %v207
    %438 = vmatpush.msra.mxu0 %v191
    %439 = vmatpush.msra.mxu0 %v175
    %440 = vmatpush.msra.mxu0 %v159
    %441 = vmatpush.msra.mxu0 %v143
    %442 = vmatpush.msra.mxu0 %v127
    %443 = vmatpush.msra.mxu0 %v111
    %444 = vmatpush.msra.mxu0 %v95
    %445 = vmatpush.msra.mxu0 %v79
    %446 = vmatpush.msra.mxu0 %v63
    %447 = vmatmul.f32.gmra.mxu0 %v58
    %v448 = vpop.f32.mrf.mxu0
    %v449 = vadd.f32 %v323, %v448
    %450 = vdwg.mxu0
    %451 = vmatpush.msra.mxu0 %v304
    %452 = vmatpush.msra.mxu0 %v288
    %453 = vmatpush.msra.mxu0 %v272
    %454 = vmatpush.msra.mxu0 %v256
    %455 = vmatpush.msra.mxu0 %v240
    %456 = vmatpush.msra.mxu0 %v224
    %457 = vmatpush.msra.mxu0 %v208
    %458 = vmatpush.msra.mxu0 %v192
    %459 = vmatpush.msra.mxu0 %v176
    %460 = vmatpush.msra.mxu0 %v160
    %461 = vmatpush.msra.mxu0 %v144
    %462 = vmatpush.msra.mxu0 %v128
    %463 = vmatpush.msra.mxu0 %v112
    %464 = vmatpush.msra.mxu0 %v96
    %465 = vmatpush.msra.mxu0 %v80
    %466 = vmatpush.msra.mxu0 %v64
    %467 = vmatmul.f32.gmra.mxu0 %v58
    %v468 = vpop.f32.mrf.mxu0
    %v469 = vadd.f32 %v324, %v468
    %470 = vdwg.mxu0
    %471 = vmatpush.msra.mxu0 %v305
    %472 = vmatpush.msra.mxu0 %v289
    %473 = vmatpush.msra.mxu0 %v273
    %474 = vmatpush.msra.mxu0 %v257
    %475 = vmatpush.msra.mxu0 %v241
    %476 = vmatpush.msra.mxu0 %v225
    %477 = vmatpush.msra.mxu0 %v209
    %478 = vmatpush.msra.mxu0 %v193
    %479 = vmatpush.msra.mxu0 %v177
    %480 = vmatpush.msra.mxu0 %v161
    %481 = vmatpush.msra.mxu0 %v145
    %482 = vmatpush.msra.mxu0 %v129
    %483 = vmatpush.msra.mxu0 %v113
    %484 = vmatpush.msra.mxu0 %v97
    %485 = vmatpush.msra.mxu0 %v81
    %486 = vmatpush.msra.mxu0 %v65
    %487 = vmatmul.f32.gmra.mxu0 %v58
    %v488 = vpop.f32.mrf.mxu0
    %v489 = vadd.f32 %v325, %v488
    %490 = vdwg.mxu0
    %491 = vmatpush.msra.mxu0 %v306
    %492 = vmatpush.msra.mxu0 %v290
    %493 = vmatpush.msra.mxu0 %v274
    %494 = vmatpush.msra.mxu0 %v258
    %495 = vmatpush.msra.mxu0 %v242
    %496 = vmatpush.msra.mxu0 %v226
    %497 = vmatpush.msra.mxu0 %v210
    %498 = vmatpush.msra.mxu0 %v194
    %499 = vmatpush.msra.mxu0 %v178
    %500 = vmatpush.msra.mxu0 %v162
    %501 = vmatpush.msra.mxu0 %v146
    %502 = vmatpush.msra.mxu0 %v130
    %503 = vmatpush.msra.mxu0 %v114
    %504 = vmatpush.msra.mxu0 %v98
    %505 = vmatpush.msra.mxu0 %v82
    %506 = vmatpush.msra.mxu0 %v66
    %507 = vmatmul.f32.gmra.mxu0 %v58
    %v508 = vpop.f32.mrf.mxu0
    %v509 = vadd.f32 %v326, %v508
    %510 = vdwg.mxu0
    %511 = vmatpush.msra.mxu0 %v307
    %512 = vmatpush.msra.mxu0 %v291
    %513 = vmatpush.msra.mxu0 %v275
    %514 = vmatpush.msra.mxu0 %v259
    %515 = vmatpush.msra.mxu0 %v243
    %516 = vmatpush.msra.mxu0 %v227
    %517 = vmatpush.msra.mxu0 %v211
    %518 = vmatpush.msra.mxu0 %v195
    %519 = vmatpush.msra.mxu0 %v179
    %520 = vmatpush.msra.mxu0 %v163
    %521 = vmatpush.msra.mxu0 %v147
    %522 = vmatpush.msra.mxu0 %v131
    %523 = vmatpush.msra.mxu0 %v115
    %524 = vmatpush.msra.mxu0 %v99
    %525 = vmatpush.msra.mxu0 %v83
    %526 = vmatpush.msra.mxu0 %v67
    %527 = vmatmul.f32.gmra.mxu0 %v58
    %v528 = vpop.f32.mrf.mxu0
    %v529 = vadd.f32 %v327, %v528
    %530 = vdwg.mxu0
    %531 = vmatpush.msra.mxu0 %v308
    %532 = vmatpush.msra.mxu0 %v292
    %533 = vmatpush.msra.mxu0 %v276
    %534 = vmatpush.msra.mxu0 %v260
    %535 = vmatpush.msra.mxu0 %v244
    %536 = vmatpush.msra.mxu0 %v228
    %537 = vmatpush.msra.mxu0 %v212
    %538 = vmatpush.msra.mxu0 %v196
    %539 = vmatpush.msra.mxu0 %v180
    %540 = vmatpush.msra.mxu0 %v164
    %541 = vmatpush.msra.mxu0 %v148
    %542 = vmatpush.msra.mxu0 %v132
    %543 = vmatpush.msra.mxu0 %v116
    %544 = vmatpush.msra.mxu0 %v100
    %545 = vmatpush.msra.mxu0 %v84
    %546 = vmatpush.msra.mxu0 %v68
    %547 = vmatmul.f32.gmra.mxu0 %v58
    %v548 = vpop.f32.mrf.mxu0
    %v549 = vadd.f32 %v328, %v548
    %550 = vdwg.mxu0
    %551 = vmatpush.msra.mxu0 %v309
    %552 = vmatpush.msra.mxu0 %v293
    %553 = vmatpush.msra.mxu0 %v277
    %554 = vmatpush.msra.mxu0 %v261
    %555 = vmatpush.msra.mxu0 %v245
    %556 = vmatpush.msra.mxu0 %v229
    %557 = vmatpush.msra.mxu0 %v213
    %558 = vmatpush.msra.mxu0 %v197
    %559 = vmatpush.msra.mxu0 %v181
    %560 = vmatpush.msra.mxu0 %v165
    %561 = vmatpush.msra.mxu0 %v149
    %562 = vmatpush.msra.mxu0 %v133
    %563 = vmatpush.msra.mxu0 %v117
    %564 = vmatpush.msra.mxu0 %v101
    %565 = vmatpush.msra.mxu0 %v85
    %566 = vmatpush.msra.mxu0 %v69
    %567 = vmatmul.f32.gmra.mxu0 %v58
    %v568 = vpop.f32.mrf.mxu0
    %v569 = vadd.f32 %v329, %v568
    %570 = vdwg.mxu0
    %571 = vmatpush.msra.mxu0 %v310
    %572 = vmatpush.msra.mxu0 %v294
    %573 = vmatpush.msra.mxu0 %v278
    %574 = vmatpush.msra.mxu0 %v262
    %575 = vmatpush.msra.mxu0 %v246
    %576 = vmatpush.msra.mxu0 %v230
    %577 = vmatpush.msra.mxu0 %v214
    %578 = vmatpush.msra.mxu0 %v198
    %579 = vmatpush.msra.mxu0 %v182
    %580 = vmatpush.msra.mxu0 %v166
    %581 = vmatpush.msra.mxu0 %v150
    %582 = vmatpush.msra.mxu0 %v134
    %583 = vmatpush.msra.mxu0 %v118
    %584 = vmatpush.msra.mxu0 %v102
    %585 = vmatpush.msra.mxu0 %v86
    %586 = vmatpush.msra.mxu0 %v70
    %587 = vmatmul.f32.gmra.mxu0 %v58
    %v588 = vpop.f32.mrf.mxu0
    %v589 = vadd.f32 %v330, %v588
    %590 = vdwg.mxu0
    %591 = vmatpush.msra.mxu0 %v311
    %592 = vmatpush.msra.mxu0 %v295
    %593 = vmatpush.msra.mxu0 %v279
    %594 = vmatpush.msra.mxu0 %v263
    %595 = vmatpush.msra.mxu0 %v247
    %596 = vmatpush.msra.mxu0 %v231
    %597 = vmatpush.msra.mxu0 %v215
    %598 = vmatpush.msra.mxu0 %v199
    %599 = vmatpush.msra.mxu0 %v183
    %600 = vmatpush.msra.mxu0 %v167
    %601 = vmatpush.msra.mxu0 %v151
    %602 = vmatpush.msra.mxu0 %v135
    %603 = vmatpush.msra.mxu0 %v119
    %604 = vmatpush.msra.mxu0 %v103
    %605 = vmatpush.msra.mxu0 %v87
    %606 = vmatpush.msra.mxu0 %v71
    %607 = vmatmul.f32.gmra.mxu0 %v58
    %v608 = vpop.f32.mrf.mxu0
    %v609 = vadd.f32 %v331, %v608
    %610 = vdwg.mxu0
    %611 = vmatpush.msra.mxu0 %v312
    %612 = vmatpush.msra.mxu0 %v296
    %613 = vmatpush.msra.mxu0 %v280
    %614 = vmatpush.msra.mxu0 %v264
    %615 = vmatpush.msra.mxu0 %v248
    %616 = vmatpush.msra.mxu0 %v232
    %617 = vmatpush.msra.mxu0 %v216
    %618 = vmatpush.msra.mxu0 %v200
    %619 = vmatpush.msra.mxu0 %v184
    %620 = vmatpush.msra.mxu0 %v168
    %621 = vmatpush.msra.mxu0 %v152
    %622 = vmatpush.msra.mxu0 %v136
    %623 = vmatpush.msra.mxu0 %v120
    %624 = vmatpush.msra.mxu0 %v104
    %625 = vmatpush.msra.mxu0 %v88
    %626 = vmatpush.msra.mxu0 %v72
    %627 = vmatmul.f32.gmra.mxu0 %v58
    %v628 = vpop.f32.mrf.mxu0
    %v629 = vadd.f32 %v332, %v628
    %630 = vdwg.mxu0
    %631 = vmatpush.msra.mxu0 %v313
    %632 = vmatpush.msra.mxu0 %v297
    %633 = vmatpush.msra.mxu0 %v281
    %634 = vmatpush.msra.mxu0 %v265
    %635 = vmatpush.msra.mxu0 %v249
    %636 = vmatpush.msra.mxu0 %v233
    %637 = vmatpush.msra.mxu0 %v217
    %638 = vmatpush.msra.mxu0 %v201
    %639 = vmatpush.msra.mxu0 %v185
    %640 = vmatpush.msra.mxu0 %v169
    %641 = vmatpush.msra.mxu0 %v153
    %642 = vmatpush.msra.mxu0 %v137
    %643 = vmatpush.msra.mxu0 %v121
    %644 = vmatpush.msra.mxu0 %v105
    %645 = vmatpush.msra.mxu0 %v89
    %646 = vmatpush.msra.mxu0 %v73
    %647 = vmatmul.f32.gmra.mxu0 %v58
    %v648 = vpop.f32.mrf.mxu0
    %v649 = vadd.f32 %v333, %v648
    %650 = vdwg.mxu0
    %651 = vmatpush.msra.mxu0 %v314
    %652 = vmatpush.msra.mxu0 %v298
    %653 = vmatpush.msra.mxu0 %v282
    %654 = vmatpush.msra.mxu0 %v266
    %655 = vmatpush.msra.mxu0 %v250
    %656 = vmatpush.msra.mxu0 %v234
    %657 = vmatpush.msra.mxu0 %v218
    %658 = vmatpush.msra.mxu0 %v202
    %659 = vmatpush.msra.mxu0 %v186
    %660 = vmatpush.msra.mxu0 %v170
    %661 = vmatpush.msra.mxu0 %v154
    %662 = vmatpush.msra.mxu0 %v138
    %663 = vmatpush.msra.mxu0 %v122
    %664 = vmatpush.msra.mxu0 %v106
    %665 = vmatpush.msra.mxu0 %v90
    %666 = vmatpush.msra.mxu0 %v74
    %667 = vmatmul.f32.gmra.mxu0 %v58
    %v668 = vpop.f32.mrf.mxu0
    %v669 = vadd.f32 %v334, %v668
    %670 = vdwg.mxu0
    %v687 = vrot.slane %v389, 6
    %v688 = vrot.slane %v409, 4
    %v689 = vrot.slane %v429, 2
    %v690 = vrot.slane %v469, 6
    %v691 = vrot.slane %v489, 4
    %v692 = vrot.slane %v509, 2
    %v693 = vrot.slane %v549, 6
    %v694 = vrot.slane %v569, 4
    %v695 = vrot.slane %v589, 2
    %v696 = vrot.slane %v629, 6
    %v697 = vrot.slane %v649, 4
    %v698 = vrot.slane %v669, 2
    %vm699 = vcmask 1041408
    %v700 = vsel %vm699, %v369, %v687
    %vm701 = vcmask 1045508
    %v702 = vsel %vm701, %v688, %v689
    %vm703 = vcmask 1043456
    %v704 = vsel %vm703, %v700, %v702
    %v705 = vsel %vm699, %v449, %v690
    %v706 = vsel %vm701, %v691, %v692
    %v707 = vsel %vm703, %v705, %v706
    %v708 = vsel %vm699, %v529, %v693
    %v709 = vsel %vm701, %v694, %v695
    %v710 = vsel %vm703, %v708, %v709
    %v711 = vsel %vm699, %v609, %v696
    %v712 = vsel %vm701, %v697, %v698
    %v713 = vsel %vm703, %v711, %v712
    %718 = vst [vmem:[#allocation8] sm:$0xff] %v704
    %719 = vst [vmem:[#allocation8 + $0x8] sm:$0xff] %v707
    %720 = vst [vmem:[#allocation8 + $0x10] sm:$0xff] %v710
    %721 = vst [vmem:[#allocation8 + $0x18] sm:$0xff] %v713
    // Predicated region
    $region26: #{tpu_custom_call.1} parent=1 // pred_check
      _
    $region27: #{tpu_custom_call.1} parent=1 // pred_check_branch
      %723 = sbr.rel (0) target = $region29
    $region28: #{tpu_custom_call.1} parent=1 // pred_region
      %725 = vsyncadd [#allocation4], 0
      %s727 = sshll.u32 [#allocation8], 4
      %s728 = int_to_ptr.vmem [resolvable:$true] %s727
      %s729 = sshll.u32 %s3, 4
      %s730 = int_to_ptr.hbm [resolvable:$true] %s729
      %732 = dma.vmem_to_hbm [thread:$0]  %s728, 512, %s730, [#allocation4]
    $region29: #{tpu_custom_call.1} parent=1 // pred_fallthru
      _
    // Predicated region
    $region30: #{tpu_custom_call.1} parent=1 // pred_check
      _
    $region31: #{tpu_custom_call.1} parent=1 // pred_check_branch
      %734 = sbr.rel (0) target = $region33
    $region32: #{tpu_custom_call.1} parent=1 // pred_region
      %736 = dma.done [#allocation4], 512
    $region33: #{tpu_custom_call.1} parent=1 // pred_fallthru
      _
    %737 = vsyncpa [#allocation3], 1
    %738 = vsyncpa [#allocation6], 1
    %739 = vsyncpa [#allocation4], 1

</llo_original>
